<compile_context>
chip_gen: v7x
topology: tpu7x:2x2x1
jax: 0.10.0
libtpu: 0.0.40
codegen_flags: <defaults>
</compile_context>

<pallas_src>
import functools

import jax
import jax.numpy as jnp
from jax.experimental import pallas as pl
from jax.experimental.pallas import tpu as pltpu


def unet_block_kernel(x_ref, m1_ref, b1_ref, m2_ref, b2_ref, o_ref, h_ref,
                      *, rows1, rows2):
    # x_ref : (nb, HP, W*Cin)     zero-padded, lane-packed image rows
    # m1_ref: (3, W*Cin, W*C1)    block-Toeplitz conv1 weights (one matrix per dy tap)
    # b1_ref: (1, W*C1)           conv1 bias tiled across width
    # m2_ref: (3, W*C1, W*C2)     block-Toeplitz conv2 weights
    # b2_ref: (1, W*C2)           conv2 bias tiled across width
    # o_ref : (nb, rows2, W*C2)   lane-dense, sublane-padded output rows
    # h_ref : (nb, HS, W*C1)      VMEM scratch for the ReLU'd conv1 activation
    nb, _, wcin = x_ref.shape
    wc1 = m1_ref.shape[2]
    wc2 = m2_ref.shape[2]
    hs = h_ref.shape[1]

    # Rows conv1 never writes are read by conv2's dy=1,2 taps -> make them
    # deterministic zeros (one full-(8,128)-tile store; rows1/hs are multiples of 8).
    if hs > rows1:
        h_ref[:, rows1:, :] = jnp.zeros((nb, hs - rows1, wc1), jnp.float32)

    # ---- conv1 (valid 3x3) + bias + ReLU: one batched MXU matmul per dy tap ----
    # rows1 is a multiple of 8, so collapsing (nb, rows1, .) -> (nb*rows1, .) is
    # layout-free, and rows of different images never mix inside a matmul.
    # Weights are f32 and read at each dot site (no big live hoist).
    acc1 = b1_ref[...]                                     # (1, wc1) -> broadcasts
    for dy in range(3):
        lhs = x_ref[:, pl.ds(dy, rows1), :].reshape(nb * rows1, wcin)
        acc1 = acc1 + jnp.dot(lhs, m1_ref[dy], preferred_element_type=jnp.float32)
    h_ref[:, :rows1, :] = jnp.maximum(acc1, 0.0).reshape(nb, rows1, wc1)

    # ---- dropout: module built with dropout=None -> nn.Identity -> no-op ----

    # ---- conv2 (valid 3x3) + bias: dy taps streamed from the VMEM scratch ----
    acc2 = b2_ref[...]
    for dy in range(3):
        lhs = h_ref[:, pl.ds(dy, rows2), :].reshape(nb * rows2, wc1)
        acc2 = acc2 + jnp.dot(lhs, m2_ref[dy], preferred_element_type=jnp.float32)
    o_ref[...] = acc2.reshape(nb, rows2, wc2).astype(o_ref.dtype)


def _round_up(x, m):
    return ((x + m - 1) // m) * m


def _conv3x3_row_matrices(w_oihw, width):
    """OIHW (Co, Ci, 3, 3) -> (3, width*Ci, width*Co) block-Toeplitz matrices.

    M[dy, x*Ci + ci, ox*Co + co] = w[co, ci, dy, x - ox]  if 0 <= x - ox < 3 else 0,
    so that  out_row[oy] = sum_dy in_row[oy + dy] @ M[dy]  computes a VALID 3x3 conv
    along the width axis (output columns ox >= width-2 are partial sums -> junk).
    """
    co_n, ci_n, kh, kw = w_oihw.shape
    w_hwio = jnp.transpose(w_oihw, (2, 3, 1, 0))          # (3, 3, Ci, Co)
    x_idx = jnp.arange(width)[:, None]                    # input column
    o_idx = jnp.arange(width)[None, :]                    # output column
    dx = x_idx - o_idx                                    # (width, width)
    valid = ((dx >= 0) & (dx < kw)).astype(w_hwio.dtype)
    dx_c = jnp.clip(dx, 0, kw - 1)
    mats = []
    for dy in range(kh):
        blk = w_hwio[dy][dx_c] * valid[:, :, None, None]  # (width, width, Ci, Co)
        blk = jnp.transpose(blk, (0, 2, 1, 3)).reshape(width * ci_n, width * co_n)
        mats.append(blk)
    return jnp.stack(mats, axis=0)                        # (3, width*Ci, width*Co)


def simple_unet_block(x_nchw, w1_oihw, b1, w2_oihw, b2, *, images_per_block=None):
    """Forward of SimpleUNetBlock(in_ch, out_ch, use_padding=False, dropout=None)."""
    N, Cin, H, W = x_nchw.shape
    C1 = w1_oihw.shape[0]
    C2 = w2_oihw.shape[0]
    H2, W2 = H - 4, W - 4
    assert H >= 5 and W >= 5, "two valid 3x3 convs need H, W >= 5"

    # Per-image row counts, padded to sublane (8) multiples for full-tile stores.
    rows1 = _round_up(H - 2, 8)                     # conv1 rows computed per image
    rows2 = _round_up(H - 4, 8)                     # conv2 rows emitted per image
    hp = _round_up(rows1 + 2, 8)                    # zero-padded input rows per image
    hs = _round_up(max(rows1, rows2 + 2), 8)        # scratch rows per image

    # Images per grid step.  Default keeps >=2 steps so both v7x TensorCores get work
    # via the "parallel" batch axis; on single-TC v5e/v6e, set images_per_block=N to
    # collapse the grid and remove the per-step overhead entirely.
    nb = images_per_block
    if nb is None:
        nb = N // 2 if (N >= 2 and N % 2 == 0) else 1
    if nb < 1 or N % nb != 0:                       # ragged batch -> fall back, no assert
        nb = 1

    # Layout plumbing (hoist to weight-load time / fuse into producer in production):
    x_rows = jnp.transpose(x_nchw, (0, 2, 3, 1)).reshape(N, H, W * Cin)
    x_rows = jnp.pad(x_rows, ((0, 0), (0, hp - H), (0, 0)))
    m1 = _conv3x3_row_matrices(w1_oihw, W)          # (3, W*Cin, W*C1)
    m2 = _conv3x3_row_matrices(w2_oihw, W)          # (3, W*C1,  W*C2)
    b1_row = jnp.tile(b1, W).reshape(1, W * C1)
    b2_row = jnp.tile(b2, W).reshape(1, W * C2)

    kernel = functools.partial(unet_block_kernel, rows1=rows1, rows2=rows2)

    out_rows = pl.pallas_call(
        kernel,
        out_shape=jax.ShapeDtypeStruct((N, rows2, W * C2), x_nchw.dtype),
        grid_spec=pltpu.PrefetchScalarGridSpec(
            num_scalar_prefetch=0,
            grid=(N // nb,),
            in_specs=[
                pl.BlockSpec((nb, hp, W * Cin), lambda n: (n, 0, 0)),
                pl.BlockSpec((3, W * Cin, W * C1), lambda n: (0, 0, 0)),
                pl.BlockSpec((1, W * C1), lambda n: (0, 0)),
                pl.BlockSpec((3, W * C1, W * C2), lambda n: (0, 0, 0)),
                pl.BlockSpec((1, W * C2), lambda n: (0, 0)),
            ],
            out_specs=pl.BlockSpec((nb, rows2, W * C2), lambda n: (n, 0, 0)),
            scratch_shapes=[pltpu.VMEM((nb, hs, W * C1), jnp.float32)],
        ),
        compiler_params=pltpu.CompilerParams(
            dimension_semantics=("parallel",),      # batch axis -> both TCs on v7x
        ),
    )(x_rows, m1, b1_row, m2, b2_row)

    # Rows >= H-4 and columns ox >= W-4 are partial-tap junk -> drop them, return NCHW.
    out = out_rows.reshape(N, rows2, W, C2)[:, :H2, :W2, :]
    return jnp.transpose(out, (0, 3, 1, 2))


def _reference_forward(x, w1, b1, w2, b2):
    """Pure-JAX reference mirroring the PyTorch module (NCHW / OIHW, valid padding)."""
    dn = ("NCHW", "OIHW", "NCHW")
    y = jax.lax.conv_general_dilated(x, w1, (1, 1), "VALID", dimension_numbers=dn)
    y = y + b1[None, :, None, None]
    y = jnp.maximum(y, 0.0)
    y = jax.lax.conv_general_dilated(y, w2, (1, 1), "VALID", dimension_numbers=dn)
    return y + b2[None, :, None, None]


if __name__ == "__main__":
    key = jax.random.PRNGKey(0)
    in_ch, out_ch = 4, 8
    N, H, W = 2, 16, 16

    k_x, k_w1, k_b1, k_w2, k_b2 = jax.random.split(key, 5)

    # deterministic synthetic parameters (shapes from nn.Conv2d(in_ch, out_ch, 3) etc.)
    bound1 = 1.0 / jnp.sqrt(in_ch * 9.0)
    bound2 = 1.0 / jnp.sqrt(out_ch * 9.0)
    w1 = jax.random.uniform(k_w1, (out_ch, in_ch, 3, 3), jnp.float32, -bound1, bound1)
    b1 = jax.random.uniform(k_b1, (out_ch,), jnp.float32, -bound1, bound1)
    w2 = jax.random.uniform(k_w2, (out_ch, out_ch, 3, 3), jnp.float32, -bound2, bound2)
    b2 = jax.random.uniform(k_b2, (out_ch,), jnp.float32, -bound2, bound2)

    x = jax.random.normal(k_x, (N, in_ch, H, W), jnp.float32)

    out = simple_unet_block(x, w1, b1, w2, b2)
    out = jax.block_until_ready(out)

    ref = jax.block_until_ready(_reference_forward(x, w1, b1, w2, b2))
    assert out.shape == (N, out_ch, H - 4, W - 4), out.shape
    # 1e-4 tolerance: MXU f32 pass rounding / different accumulation order vs. XLA conv.
    assert jnp.allclose(out, ref, rtol=1e-4, atol=1e-4), float(jnp.max(jnp.abs(out - ref)))

    print("KERNEL_OK")
</pallas_src>

<mosaic_0001>
module attributes {stable_mosaic.version = 11 : i64} {
  func.func @unet_block_kernel(%arg0: i32, %arg1: memref<1x24x64xf32, #tpu.memory_space<vmem>>, %arg2: memref<3x64x128xf32, #tpu.memory_space<vmem>>, %arg3: memref<1x128xf32, #tpu.memory_space<vmem>>, %arg4: memref<3x128x128xf32, #tpu.memory_space<vmem>>, %arg5: memref<1x128xf32, #tpu.memory_space<vmem>>, %arg6: memref<1x16x128xf32, #tpu.memory_space<vmem>>, %arg7: memref<1x24x128xf32, #tpu.memory_space<vmem>>) attributes {dimension_semantics = [#tpu.dimension_semantics<parallel>], iteration_bounds = array<i64: 2>, scalar_prefetch = 0 : i64, scratch_operands = 1 : i64, tpu.core_type = #tpu.core_type<tc>, window_params = [{transform_indices = @transform_0, window_bounds = array<i64: 1, 24, 64>}, {pipeline_mode = #tpu.pipeline_mode<synchronous>, transform_indices = @transform_1, window_bounds = array<i64: 3, 64, 128>}, {pipeline_mode = #tpu.pipeline_mode<synchronous>, transform_indices = @transform_2, window_bounds = array<i64: 1, 128>}, {pipeline_mode = #tpu.pipeline_mode<synchronous>, transform_indices = @transform_3, window_bounds = array<i64: 3, 128, 128>}, {pipeline_mode = #tpu.pipeline_mode<synchronous>, transform_indices = @transform_4, window_bounds = array<i64: 1, 128>}, {transform_indices = @transform_5, window_bounds = array<i64: 1, 16, 128>}]} {
    %cst = arith.constant 0.000000e+00 : f32
    %0 = vector.broadcast %cst : f32 to vector<1x8x128xf32>
    %c0 = arith.constant 0 : index
    %c16 = arith.constant 16 : index
    %c0_0 = arith.constant 0 : index
    %1 = vector.load %arg7[%c0, %c16, %c0_0] : memref<1x24x128xf32, #tpu.memory_space<vmem>>, vector<1x8x128xf32>
    tpu.vector_store %arg7[%c0, %c16, %c0_0], %0 {strides = array<i32>} : memref<1x24x128xf32, #tpu.memory_space<vmem>>, vector<1x8x128xf32>,
    %c0_1 = arith.constant 0 : index
    %c0_2 = arith.constant 0 : index
    %2 = vector.load %arg3[%c0_1, %c0_2] : memref<1x128xf32, #tpu.memory_space<vmem>>, vector<1x128xf32>
    %c0_3 = arith.constant 0 : index
    %c0_4 = arith.constant 0 : index
    %c0_5 = arith.constant 0 : index
    %3 = vector.load %arg1[%c0_3, %c0_4, %c0_5] : memref<1x24x64xf32, #tpu.memory_space<vmem>>, vector<1x16x64xf32>
    %4 = vector.shape_cast %3 : vector<1x16x64xf32> to vector<16x64xf32>
    %c0_6 = arith.constant 0 : index
    %c0_7 = arith.constant 0 : index
    %c0_8 = arith.constant 0 : index
    %5 = vector.load %arg2[%c0_6, %c0_7, %c0_8] : memref<3x64x128xf32, #tpu.memory_space<vmem>>, vector<1x64x128xf32>
    %6 = vector.shape_cast %5 : vector<1x64x128xf32> to vector<64x128xf32>
    %cst_9 = arith.constant dense<0.000000e+00> : vector<16x128xf32>
    %7 = tpu.matmul %4, %6, %cst_9 {dimension_numbers = #tpu.dot_dimension_numbers<[1], [0], [0], [1], [0, 0, 1, 1], [], []>} : vector<16x64xf32>, vector<64x128xf32>, vector<16x128xf32> -> vector<16x128xf32>
    %8 = vector.broadcast %2 : vector<1x128xf32> to vector<16x128xf32>
    %9 = arith.addf %8, %7 : vector<16x128xf32>
    %c0_10 = arith.constant 0 : index
    %c1 = arith.constant 1 : index
    %c0_11 = arith.constant 0 : index
    %10 = vector.load %arg1[%c0_10, %c1, %c0_11] : memref<1x24x64xf32, #tpu.memory_space<vmem>>, vector<1x16x64xf32>
    %11 = vector.shape_cast %10 : vector<1x16x64xf32> to vector<16x64xf32>
    %c1_12 = arith.constant 1 : index
    %c0_13 = arith.constant 0 : index
    %c0_14 = arith.constant 0 : index
    %12 = vector.load %arg2[%c1_12, %c0_13, %c0_14] : memref<3x64x128xf32, #tpu.memory_space<vmem>>, vector<1x64x128xf32>
    %13 = vector.shape_cast %12 : vector<1x64x128xf32> to vector<64x128xf32>
    %cst_15 = arith.constant dense<0.000000e+00> : vector<16x128xf32>
    %14 = tpu.matmul %11, %13, %cst_15 {dimension_numbers = #tpu.dot_dimension_numbers<[1], [0], [0], [1], [0, 0, 1, 1], [], []>} : vector<16x64xf32>, vector<64x128xf32>, vector<16x128xf32> -> vector<16x128xf32>
    %15 = arith.addf %9, %14 : vector<16x128xf32>
    %c0_16 = arith.constant 0 : index
    %c2 = arith.constant 2 : index
    %c0_17 = arith.constant 0 : index
    %16 = vector.load %arg1[%c0_16, %c2, %c0_17] : memref<1x24x64xf32, #tpu.memory_space<vmem>>, vector<1x16x64xf32>
    %17 = vector.shape_cast %16 : vector<1x16x64xf32> to vector<16x64xf32>
    %c2_18 = arith.constant 2 : index
    %c0_19 = arith.constant 0 : index
    %c0_20 = arith.constant 0 : index
    %18 = vector.load %arg2[%c2_18, %c0_19, %c0_20] : memref<3x64x128xf32, #tpu.memory_space<vmem>>, vector<1x64x128xf32>
    %19 = vector.shape_cast %18 : vector<1x64x128xf32> to vector<64x128xf32>
    %cst_21 = arith.constant dense<0.000000e+00> : vector<16x128xf32>
    %20 = tpu.matmul %17, %19, %cst_21 {dimension_numbers = #tpu.dot_dimension_numbers<[1], [0], [0], [1], [0, 0, 1, 1], [], []>} : vector<16x64xf32>, vector<64x128xf32>, vector<16x128xf32> -> vector<16x128xf32>
    %21 = arith.addf %15, %20 : vector<16x128xf32>
    %cst_22 = arith.constant 0.000000e+00 : f32
    %22 = vector.broadcast %cst_22 : f32 to vector<16x128xf32>
    %23 = arith.maximumf %21, %22 : vector<16x128xf32>
    %24 = vector.shape_cast %23 : vector<16x128xf32> to vector<1x16x128xf32>
    %c0_23 = arith.constant 0 : index
    %c0_24 = arith.constant 0 : index
    %c0_25 = arith.constant 0 : index
    %25 = vector.load %arg7[%c0_23, %c0_24, %c0_25] : memref<1x24x128xf32, #tpu.memory_space<vmem>>, vector<1x16x128xf32>
    tpu.vector_store %arg7[%c0_23, %c0_24, %c0_25], %24 {strides = array<i32>} : memref<1x24x128xf32, #tpu.memory_space<vmem>>, vector<1x16x128xf32>,
    %c0_26 = arith.constant 0 : index
    %c0_27 = arith.constant 0 : index
    %26 = vector.load %arg5[%c0_26, %c0_27] : memref<1x128xf32, #tpu.memory_space<vmem>>, vector<1x128xf32>
    %c0_28 = arith.constant 0 : index
    %c0_29 = arith.constant 0 : index
    %c0_30 = arith.constant 0 : index
    %27 = vector.load %arg7[%c0_28, %c0_29, %c0_30] : memref<1x24x128xf32, #tpu.memory_space<vmem>>, vector<1x16x128xf32>
    %28 = vector.shape_cast %27 : vector<1x16x128xf32> to vector<16x128xf32>
    %c0_31 = arith.constant 0 : index
    %c0_32 = arith.constant 0 : index
    %c0_33 = arith.constant 0 : index
    %29 = vector.load %arg4[%c0_31, %c0_32, %c0_33] : memref<3x128x128xf32, #tpu.memory_space<vmem>>, vector<1x128x128xf32>
    %30 = vector.shape_cast %29 : vector<1x128x128xf32> to vector<128x128xf32>
    %cst_34 = arith.constant dense<0.000000e+00> : vector<16x128xf32>
    %31 = tpu.matmul %28, %30, %cst_34 {dimension_numbers = #tpu.dot_dimension_numbers<[1], [0], [0], [1], [0, 0, 1, 1], [], []>} : vector<16x128xf32>, vector<128x128xf32>, vector<16x128xf32> -> vector<16x128xf32>
    %32 = vector.broadcast %26 : vector<1x128xf32> to vector<16x128xf32>
    %33 = arith.addf %32, %31 : vector<16x128xf32>
    %c0_35 = arith.constant 0 : index
    %c1_36 = arith.constant 1 : index
    %c0_37 = arith.constant 0 : index
    %34 = vector.load %arg7[%c0_35, %c1_36, %c0_37] : memref<1x24x128xf32, #tpu.memory_space<vmem>>, vector<1x16x128xf32>
    %35 = vector.shape_cast %34 : vector<1x16x128xf32> to vector<16x128xf32>
    %c1_38 = arith.constant 1 : index
    %c0_39 = arith.constant 0 : index
    %c0_40 = arith.constant 0 : index
    %36 = vector.load %arg4[%c1_38, %c0_39, %c0_40] : memref<3x128x128xf32, #tpu.memory_space<vmem>>, vector<1x128x128xf32>
    %37 = vector.shape_cast %36 : vector<1x128x128xf32> to vector<128x128xf32>
    %cst_41 = arith.constant dense<0.000000e+00> : vector<16x128xf32>
    %38 = tpu.matmul %35, %37, %cst_41 {dimension_numbers = #tpu.dot_dimension_numbers<[1], [0], [0], [1], [0, 0, 1, 1], [], []>} : vector<16x128xf32>, vector<128x128xf32>, vector<16x128xf32> -> vector<16x128xf32>
    %39 = arith.addf %33, %38 : vector<16x128xf32>
    %c0_42 = arith.constant 0 : index
    %c2_43 = arith.constant 2 : index
    %c0_44 = arith.constant 0 : index
    %40 = vector.load %arg7[%c0_42, %c2_43, %c0_44] : memref<1x24x128xf32, #tpu.memory_space<vmem>>, vector<1x16x128xf32>
    %41 = vector.shape_cast %40 : vector<1x16x128xf32> to vector<16x128xf32>
    %c2_45 = arith.constant 2 : index
    %c0_46 = arith.constant 0 : index
    %c0_47 = arith.constant 0 : index
    %42 = vector.load %arg4[%c2_45, %c0_46, %c0_47] : memref<3x128x128xf32, #tpu.memory_space<vmem>>, vector<1x128x128xf32>
    %43 = vector.shape_cast %42 : vector<1x128x128xf32> to vector<128x128xf32>
    %cst_48 = arith.constant dense<0.000000e+00> : vector<16x128xf32>
    %44 = tpu.matmul %41, %43, %cst_48 {dimension_numbers = #tpu.dot_dimension_numbers<[1], [0], [0], [1], [0, 0, 1, 1], [], []>} : vector<16x128xf32>, vector<128x128xf32>, vector<16x128xf32> -> vector<16x128xf32>
    %45 = arith.addf %39, %44 : vector<16x128xf32>
    %46 = vector.shape_cast %45 : vector<16x128xf32> to vector<1x16x128xf32>
    %c0_49 = arith.constant 0 : index
    %c0_50 = arith.constant 0 : index
    %c0_51 = arith.constant 0 : index
    %47 = vector.load %arg6[%c0_49, %c0_50, %c0_51] : memref<1x16x128xf32, #tpu.memory_space<vmem>>, vector<1x16x128xf32>
    tpu.vector_store %arg6[%c0_49, %c0_50, %c0_51], %46 {strides = array<i32>} : memref<1x16x128xf32, #tpu.memory_space<vmem>>, vector<1x16x128xf32>,
    return
  }
  func.func @transform_0(%arg0: i32) -> (i32, i32, i32) {
    %c0_i32 = arith.constant 0 : i32
    %c0_i32_0 = arith.constant 0 : i32
    %c0_i32_1 = arith.constant 0 : i32
    return %arg0, %c0_i32, %c0_i32_0 : i32, i32, i32
  }
  func.func @transform_1(%arg0: i32) -> (i32, i32, i32) {
    %c0_i32 = arith.constant 0 : i32
    %c0_i32_0 = arith.constant 0 : i32
    %c0_i32_1 = arith.constant 0 : i32
    %c0_i32_2 = arith.constant 0 : i32
    return %c0_i32, %c0_i32_0, %c0_i32_1 : i32, i32, i32
  }
  func.func @transform_2(%arg0: i32) -> (i32, i32) {
    %c0_i32 = arith.constant 0 : i32
    %c0_i32_0 = arith.constant 0 : i32
    %c0_i32_1 = arith.constant 0 : i32
    return %c0_i32, %c0_i32_0 : i32, i32
  }
  func.func @transform_3(%arg0: i32) -> (i32, i32, i32) {
    %c0_i32 = arith.constant 0 : i32
    %c0_i32_0 = arith.constant 0 : i32
    %c0_i32_1 = arith.constant 0 : i32
    %c0_i32_2 = arith.constant 0 : i32
    return %c0_i32, %c0_i32_0, %c0_i32_1 : i32, i32, i32
  }
  func.func @transform_4(%arg0: i32) -> (i32, i32) {
    %c0_i32 = arith.constant 0 : i32
    %c0_i32_0 = arith.constant 0 : i32
    %c0_i32_1 = arith.constant 0 : i32
    return %c0_i32, %c0_i32_0 : i32, i32
  }
  func.func @transform_5(%arg0: i32) -> (i32, i32, i32) {
    %c0_i32 = arith.constant 0 : i32
    %c0_i32_0 = arith.constant 0 : i32
    %c0_i32_1 = arith.constant 0 : i32
    return %arg0, %c0_i32, %c0_i32_0 : i32, i32, i32
  }
}

</mosaic_0001>

<llo_original>
// kernel: tpu_custom_call.1
$region0: #{tpu_custom_call.1}
  #allocation0 [shape = 'u32[]', space=smem, size = 0x4, offset = 0x4, fixed_abs, tag = 'smem constant byte address 0x4 - core index']
  #allocation1 [shape = 'u32[144,128]{1,0:T(1,128)}', space=vmem, size = 0x12000, scoped, tag = 'internal scratch']
  #allocation2 [shape = 'f32[1,24,128]{2,1,0:T(8,128)}', space=vmem, size = 0x3000, scoped, tag = 'scratch operand']
  %s0 = inlined_call_operand.hbm [shape: f32[2,24,64], index: 0, kind: input, shape index: {}]
  %s1 = inlined_call_operand.hbm [shape: f32[3,64,128], index: 1, kind: input, shape index: {}]
  %s2 = inlined_call_operand.vmem [shape: f32[1,128], index: 2, kind: input, shape index: {}]
  %s3 = inlined_call_operand.hbm [shape: f32[3,128,128], index: 3, kind: input, shape index: {}]
  %s4 = inlined_call_operand.vmem [shape: f32[1,128], index: 4, kind: input, shape index: {}]
  %s5 = inlined_call_operand.hbm [shape: f32[2,16,128], index: 5, kind: output, shape index: {}]
  %s6 = sld [smem:[#allocation0]]
  $region65: #{tpu_custom_call.1} parent=0
    _
  %s8 = ssub.s32 1, %s6
  %s9 = scalar_select 0, %s8, %s6
  $region1: #{tpu_custom_call.1} parent=0
    #allocation3 [shape = 'u8[24576]{0}', space=vmem, size = 0x6000, scoped, tag = 'input window, operand 0']
    #allocation4 [shape = 's32[2]{0}', space=sflag, size = 0x8, scoped, tag = 'scoped memory for tpu_custom_call.1']
    #allocation5 [shape = 's32[2]{0}', space=sflag, size = 0x8, scoped, tag = 'scoped memory for tpu_custom_call.1']
    #allocation6 [shape = 'u8[98304]{0}', space=vmem, size = 0x18000, scoped, tag = 'input window, operand 1, single buffered']
    #allocation7 [shape = 's32[1]{0}', space=sflag, size = 0x4, scoped, tag = 'scoped memory for tpu_custom_call.1']
    #allocation8 [shape = 'u8[196608]{0}', space=vmem, size = 0x30000, scoped, tag = 'input window, operand 3, single buffered']
    #allocation9 [shape = 'u8[16384]{0}', space=vmem, size = 0x4000, scoped, tag = 'output window, operand 0']
    %10 = vsyncpa [#allocation4], 0
    %s11 = scalar_lea.sflag [#allocation4], 1
    %12 = vsyncpa %s11, 0
    %13 = vsyncpa [#allocation7], 0
    %14 = vsyncpa [#allocation5], 0
    %s15 = scalar_lea.sflag [#allocation5], 1
    %16 = vsyncpa %s15, 0
    loop: start=0, step=1, limit=4
    $region2: #{tpu_custom_call.1} parent=1 // loop_pre_header
      _
    $region3: #{tpu_custom_call.1} parent=1 // loop_header
      %s18 = sphi 0, %s22
      %p19 = scmp.ge.s32.totalorder %s18, 4
      %s28 = sphi 0, %s30
      %s31 = sphi 0, %s28
      %s32 = sphi 0, %s31
      %s48 = sphi 0, %s32
      %s52 = sphi 0, %s52
      %s54 = sphi 0, %s52
      %s55 = sphi 0, %s54
      %s69 = sphi 0, %s55
      %s73 = sphi 0, %s73
      %s75 = sphi 0, %s73
      %s76 = sphi 0, %s75
      %s90 = sphi 0, %s76
      %s94 = sphi 0, %s94
      %s96 = sphi 0, %s94
      %s97 = sphi 0, %s96
      %s111 = sphi 0, %s97
      %s115 = sphi 0, %s115
      %s117 = sphi 0, %s115
      %s118 = sphi 0, %s117
      %s132 = sphi 0, %s118
      %s138 = sphi 0, %s140
      %s141 = sphi 0, %s138
      %s142 = sphi 0, %s141
      %s158 = sphi 0, %s142
    $region4: #{tpu_custom_call.1} parent=1 // loop_header_branch
      %21 = sbr.rel (%p19) target = $region8
    $region5: #{tpu_custom_call.1} parent=1 // loop_body
      %s23 = ssub.s32 %s18, 1
      %s24 = ssub.s32 %s18, 2
      %s25 = sadd.s32 %s18, 1
      %s26 = ssub.s32 %s18, %s25
      %p27 = scmp.eq.s32.totalorder %s26, 0
      %s29 = sadd.s32 %s28, 1
      %s30 = scalar_select %p27, %s28, %s29
      %p33 = pneg %p27
      %p34 = scmp.eq.s32.totalorder %s18, 1
      %p35 = por %p33, %p34
      %p36 = scmp.ne.s32.totalorder %s28, %s31
      %p37 = scmp.eq.s32.totalorder %s18, 0
      %p38 = por %p36, %p37
      %p39 = scmp.ne.s32.totalorder %s28, %s31
      %p40 = scmp.eq.s32.totalorder %s23, 1
      %p41 = por %p39, %p40
      %p42 = scmp.ne.s32.totalorder %s31, %s32
      %p43 = scmp.eq.s32.totalorder %s23, 0
      %p44 = por %p42, %p43
      %p45 = scmp.ne.s32.totalorder %s31, %s32
      %p46 = scmp.eq.s32.totalorder %s24, 1
      %p47 = por %p45, %p46
      %p49 = scmp.ne.s32.totalorder %s32, %s48
      %p50 = scmp.eq.s32.totalorder %s24, 0
      %p51 = por %p49, %p50
      %s53 = sadd.s32 %s52, 1
      %p56 = scmp.eq.s32.totalorder %s18, 1
      %p57 = scmp.ne.s32.totalorder %s52, %s54
      %p58 = scmp.eq.s32.totalorder %s18, 0
      %p59 = por %p57, %p58
      %p60 = scmp.ne.s32.totalorder %s52, %s54
      %p61 = scmp.eq.s32.totalorder %s23, 1
      %p62 = por %p60, %p61
      %p63 = scmp.ne.s32.totalorder %s54, %s55
      %p64 = scmp.eq.s32.totalorder %s23, 0
      %p65 = por %p63, %p64
      %p66 = scmp.ne.s32.totalorder %s54, %s55
      %p67 = scmp.eq.s32.totalorder %s24, 1
      %p68 = por %p66, %p67
      %p70 = scmp.ne.s32.totalorder %s55, %s69
      %p71 = scmp.eq.s32.totalorder %s24, 0
      %p72 = por %p70, %p71
      %s74 = sadd.s32 %s73, 1
      %p77 = scmp.eq.s32.totalorder %s18, 1
      %p78 = scmp.ne.s32.totalorder %s73, %s75
      %p79 = scmp.eq.s32.totalorder %s18, 0
      %p80 = por %p78, %p79
      %p81 = scmp.ne.s32.totalorder %s73, %s75
      %p82 = scmp.eq.s32.totalorder %s23, 1
      %p83 = por %p81, %p82
      %p84 = scmp.ne.s32.totalorder %s75, %s76
      %p85 = scmp.eq.s32.totalorder %s23, 0
      %p86 = por %p84, %p85
      %p87 = scmp.ne.s32.totalorder %s75, %s76
      %p88 = scmp.eq.s32.totalorder %s24, 1
      %p89 = por %p87, %p88
      %p91 = scmp.ne.s32.totalorder %s76, %s90
      %p92 = scmp.eq.s32.totalorder %s24, 0
      %p93 = por %p91, %p92
      %s95 = sadd.s32 %s94, 1
      %p98 = scmp.eq.s32.totalorder %s18, 1
      %p99 = scmp.ne.s32.totalorder %s94, %s96
      %p100 = scmp.eq.s32.totalorder %s18, 0
      %p101 = por %p99, %p100
      %p102 = scmp.ne.s32.totalorder %s94, %s96
      %p103 = scmp.eq.s32.totalorder %s23, 1
      %p104 = por %p102, %p103
      %p105 = scmp.ne.s32.totalorder %s96, %s97
      %p106 = scmp.eq.s32.totalorder %s23, 0
      %p107 = por %p105, %p106
      %p108 = scmp.ne.s32.totalorder %s96, %s97
      %p109 = scmp.eq.s32.totalorder %s24, 1
      %p110 = por %p108, %p109
      %p112 = scmp.ne.s32.totalorder %s97, %s111
      %p113 = scmp.eq.s32.totalorder %s24, 0
      %p114 = por %p112, %p113
      %s116 = sadd.s32 %s115, 1
      %p119 = scmp.eq.s32.totalorder %s18, 1
      %p120 = scmp.ne.s32.totalorder %s115, %s117
      %p121 = scmp.eq.s32.totalorder %s18, 0
      %p122 = por %p120, %p121
      %p123 = scmp.ne.s32.totalorder %s115, %s117
      %p124 = scmp.eq.s32.totalorder %s23, 1
      %p125 = por %p123, %p124
      %p126 = scmp.ne.s32.totalorder %s117, %s118
      %p127 = scmp.eq.s32.totalorder %s23, 0
      %p128 = por %p126, %p127
      %p129 = scmp.ne.s32.totalorder %s117, %s118
      %p130 = scmp.eq.s32.totalorder %s24, 1
      %p131 = por %p129, %p130
      %p133 = scmp.ne.s32.totalorder %s118, %s132
      %p134 = scmp.eq.s32.totalorder %s24, 0
      %p135 = por %p133, %p134
      %s136 = ssub.s32 %s18, %s25
      %p137 = scmp.eq.s32.totalorder %s136, 0
      %s139 = sadd.s32 %s138, 1
      %s140 = scalar_select %p137, %s138, %s139
      %p143 = pneg %p137
      %p144 = scmp.eq.s32.totalorder %s18, 1
      %p145 = por %p143, %p144
      %p146 = scmp.ne.s32.totalorder %s138, %s141
      %p147 = scmp.eq.s32.totalorder %s18, 0
      %p148 = por %p146, %p147
      %p149 = scmp.ne.s32.totalorder %s138, %s141
      %p150 = scmp.eq.s32.totalorder %s23, 1
      %p151 = por %p149, %p150
      %p152 = scmp.ne.s32.totalorder %s141, %s142
      %p153 = scmp.eq.s32.totalorder %s23, 0
      %p154 = por %p152, %p153
      %p155 = scmp.ne.s32.totalorder %s141, %s142
      %p156 = scmp.eq.s32.totalorder %s24, 1
      %p157 = por %p155, %p156
      %p159 = scmp.ne.s32.totalorder %s142, %s158
      %p160 = scmp.eq.s32.totalorder %s24, 0
      %p161 = por %p159, %p160
      %p162 = scmp.le.s32.totalorder 1, %s18
      %p163 = scmp.lt.s32.totalorder %s18, 3
      %p164 = pnand %p162, %p163
      %p165 = pneg %p164
      // Predicated region
      $region9: #{tpu_custom_call.1} parent=5 // pred_check
        _
      $region10: #{tpu_custom_call.1} parent=5 // pred_check_branch
        %167 = sbr.rel (%p164) target = $region12
      $region11: #{tpu_custom_call.1} parent=5 // pred_region
        %s168 = ssub.s32 %s18, 1
        // Predicated region
        $region13: #{tpu_custom_call.1} parent=11 // pred_check
          %p169 = pneg %p65
        $region14: #{tpu_custom_call.1} parent=11 // pred_check_branch
          %171 = sbr.rel (%p169) target = $region16
        $region15: #{tpu_custom_call.1} parent=11 // pred_region
          %s173 = ssub.s32 3072, 3072
          %174 = vsyncadd [#allocation7], %s173
          %s175 = sshll.u32 [#allocation6], 4
          %s176 = int_to_ptr.vmem [resolvable:$true] %s175
          %181 = dma.hbm_to_vmem [thread:$0]  %s1, 3072, %s176, [#allocation7], 128, 128, 8
        $region16: #{tpu_custom_call.1} parent=11 // pred_fallthru
          _
        // Predicated region
        $region17: #{tpu_custom_call.1} parent=11 // pred_check
          %p182 = pneg %p86
        $region18: #{tpu_custom_call.1} parent=11 // pred_check_branch
          %184 = sbr.rel (%p182) target = $region20
        $region19: #{tpu_custom_call.1} parent=11 // pred_region
          _
        $region20: #{tpu_custom_call.1} parent=11 // pred_fallthru
          _
        // Predicated region
        $region21: #{tpu_custom_call.1} parent=11 // pred_check
          %p185 = pneg %p107
        $region22: #{tpu_custom_call.1} parent=11 // pred_check_branch
          %187 = sbr.rel (%p185) target = $region24
        $region23: #{tpu_custom_call.1} parent=11 // pred_region
          %s189 = ssub.s32 6144, 6144
          %190 = vsyncadd [#allocation7], %s189
          %s191 = sshll.u32 [#allocation8], 4
          %s192 = int_to_ptr.vmem [resolvable:$true] %s191
          %197 = dma.hbm_to_vmem [thread:$0]  %s3, 6144, %s192, [#allocation7], 128, 128, 8
        $region24: #{tpu_custom_call.1} parent=11 // pred_fallthru
          _
        // Predicated region
        $region25: #{tpu_custom_call.1} parent=11 // pred_check
          %p198 = pneg %p128
        $region26: #{tpu_custom_call.1} parent=11 // pred_check_branch
          %200 = sbr.rel (%p198) target = $region28
        $region27: #{tpu_custom_call.1} parent=11 // pred_region
          _
        $region28: #{tpu_custom_call.1} parent=11 // pred_fallthru
          _
      $region12: #{tpu_custom_call.1} parent=5 // pred_fallthru
        _
      %p201 = scmp.lt.s32.totalorder %s18, 2
      // Predicated region
      $region29: #{tpu_custom_call.1} parent=5 // pred_check
        %p202 = pneg %p201
      $region30: #{tpu_custom_call.1} parent=5 // pred_check_branch
        %204 = sbr.rel (%p202) target = $region32
      $region31: #{tpu_custom_call.1} parent=5 // pred_region
        // Predicated region
        $region33: #{tpu_custom_call.1} parent=31 // pred_check
          %p205 = pneg %p38
        $region34: #{tpu_custom_call.1} parent=31 // pred_check_branch
          %207 = sbr.rel (%p205) target = $region36
        $region35: #{tpu_custom_call.1} parent=31 // pred_region
          %s208 = sand.u32 %s28, 1
          %s209 = scalar_lea.sflag [#allocation4], %s208
          %s210 = sand.u32 %s28, 1
          %s211 = smul.addr %s210, 24
          %s212 = scalar_lea.vmem [#allocation3], %s211
          %s214 = ssub.s32 384, 384
          %215 = vsyncadd %s209, %s214
          %s216 = smul.addr %s18, 3
          %s217 = smul.addr %s216, 128
          %s218 = scalar_lea.hbm %s0, %s217
          %s219 = sshll.u32 %s212, 4
          %s220 = int_to_ptr.vmem [resolvable:$true] %s219
          %225 = dma.hbm_to_vmem [thread:$0]  %s218, 384, %s220, %s209, 128, 128, 8
        $region36: #{tpu_custom_call.1} parent=31 // pred_fallthru
          _
      $region32: #{tpu_custom_call.1} parent=5 // pred_fallthru
        _
      %p226 = scmp.le.s32.totalorder 1, %s18
      %p227 = scmp.lt.s32.totalorder %s18, 3
      %p228 = pnand %p226, %p227
      %p229 = pneg %p228
      // Predicated region
      $region37: #{tpu_custom_call.1} parent=5 // pred_check
        _
      $region38: #{tpu_custom_call.1} parent=5 // pred_check_branch
        %231 = sbr.rel (%p228) target = $region40
      $region39: #{tpu_custom_call.1} parent=5 // pred_region
        %s232 = ssub.s32 %s18, 1
        %s233 = sand.u32 %s31, 1
        %s234 = scalar_lea.sflag [#allocation4], %s233
        %s235 = sand.u32 %s31, 1
        %s236 = smul.addr %s235, 24
        %s237 = scalar_lea.vmem [#allocation3], %s236
        // Predicated region
        $region41: #{tpu_custom_call.1} parent=39 // pred_check
          %p238 = pneg %p44
        $region42: #{tpu_custom_call.1} parent=39 // pred_check_branch
          %240 = sbr.rel (%p238) target = $region44
        $region43: #{tpu_custom_call.1} parent=39 // pred_region
          %241 = dma.done %s234, 384
        $region44: #{tpu_custom_call.1} parent=39 // pred_fallthru
          _
        // Predicated region
        $region45: #{tpu_custom_call.1} parent=39 // pred_check
          %p242 = pneg %p65
        $region46: #{tpu_custom_call.1} parent=39 // pred_check_branch
          %244 = sbr.rel (%p242) target = $region48
        $region47: #{tpu_custom_call.1} parent=39 // pred_region
          %245 = dma.done [#allocation7], 3072
        $region48: #{tpu_custom_call.1} parent=39 // pred_fallthru
          _
        // Predicated region
        $region49: #{tpu_custom_call.1} parent=39 // pred_check
          %p246 = pneg %p107
        $region50: #{tpu_custom_call.1} parent=39 // pred_check_branch
          %248 = sbr.rel (%p246) target = $region52
        $region51: #{tpu_custom_call.1} parent=39 // pred_region
          %249 = dma.done [#allocation7], 6144
        $region52: #{tpu_custom_call.1} parent=39 // pred_fallthru
          _
        %s250 = sand.u32 %s31, 1
        %s251 = scalar_lea.sflag [#allocation4], %s250
        %s252 = sand.u32 %s31, 1
        %s253 = smul.addr %s252, 24
        %s254 = scalar_lea.vmem [#allocation3], %s253
        %p255 = pneg %p44
        %p256 = pneg %p41
        %p257 = pneg %p65
        %p258 = pneg %p62
        %p259 = pneg %p86
        %p260 = pneg %p83
        %p261 = pneg %p107
        %p262 = pneg %p104
        %p263 = pneg %p128
        %p264 = pneg %p125
        %p265 = pneg %p154
        %p266 = pneg %p151
        %s267 = sand.u32 %s141, 1
        %s268 = scalar_lea.sflag [#allocation5], %s267
        %s269 = sand.u32 %s141, 1
        %s270 = smul.addr %s269, 16
        %s271 = scalar_lea.vmem [#allocation9], %s270
        %272 = vst [vmem:[#allocation2 + $0x10] sm:$0xff] 0.0
        %v273 = vld [vmem:[%s2] sm:$0x1]
        %v274 = vld [vmem:[%s237] sm:$0xff]
        %v275 = vld [vmem:[%s237 + $0x8] sm:$0xff]
        %v276 = vld [vmem:[#allocation6] sm:$0xff]
        %v277 = vld [vmem:[#allocation6 + $0x8] sm:$0xff]
        %v278 = vld [vmem:[#allocation6 + $0x10] sm:$0xff]
        %v279 = vld [vmem:[#allocation6 + $0x18] sm:$0xff]
        %v280 = vld [vmem:[#allocation6 + $0x20] sm:$0xff]
        %v281 = vld [vmem:[#allocation6 + $0x28] sm:$0xff]
        %v282 = vld [vmem:[#allocation6 + $0x30] sm:$0xff]
        %v283 = vld [vmem:[#allocation6 + $0x38] sm:$0xff]
        %vm284 = vcmask 523264
        %v286 = vsel %vm284, %v274, 0
        %v289 = vsel %vm284, %v275, 0
        %291 = vmatprep.subr.mxu0 0.0
        %292 = vmatpush1.msra.mxu0 %v276
        %293 = vmatprep.subr.mxu0 0.0
        %294 = vmatpush1.msra.mxu0 %v277
        %295 = vmatprep.subr.mxu0 0.0
        %296 = vmatpush1.msra.mxu0 %v278
        %297 = vmatprep.subr.mxu0 0.0
        %298 = vmatpush1.msra.mxu0 %v279
        %299 = vmatprep.subr.mxu0 0.0
        %300 = vmatpush1.msra.mxu0 %v280
        %301 = vmatprep.subr.mxu0 0.0
        %302 = vmatpush1.msra.mxu0 %v281
        %303 = vmatprep.subr.mxu0 0.0
        %304 = vmatpush1.msra.mxu0 %v282
        %305 = vmatprep.subr.mxu0 0.0
        %306 = vmatpush1.msra.mxu0 %v283
        %307 = vmatprep.subr.mxu0 0.0
        %308 = vmatpush1.msra.mxu0 0.0
        %309 = vmatprep.subr.mxu0 0.0
        %310 = vmatpush1.msra.mxu0 0.0
        %311 = vmatprep.subr.mxu0 0.0
        %312 = vmatpush1.msra.mxu0 0.0
        %313 = vmatprep.subr.mxu0 0.0
        %314 = vmatpush1.msra.mxu0 0.0
        %315 = vmatprep.subr.mxu0 0.0
        %316 = vmatpush1.msra.mxu0 0.0
        %317 = vmatprep.subr.mxu0 0.0
        %318 = vmatpush1.msra.mxu0 0.0
        %319 = vmatprep.subr.mxu0 0.0
        %320 = vmatpush1.msra.mxu0 0.0
        %321 = vmatprep.subr.mxu0 0.0
        %322 = vmatpush1.msra.mxu0 0.0
        %323 = vmatprep.subr.mxu0 0.0
        %324 = vmatpush1.msra.mxu0 0.0
        %325 = vmatprep.subr.mxu0 0.0
        %326 = vmatpush1.msra.mxu0 0.0
        %327 = vmatprep.subr.mxu0 0.0
        %328 = vmatpush1.msra.mxu0 0.0
        %329 = vmatprep.subr.mxu0 0.0
        %330 = vmatpush1.msra.mxu0 0.0
        %331 = vmatprep.subr.mxu0 0.0
        %332 = vmatpush1.msra.mxu0 0.0
        %333 = vmatprep.subr.mxu0 0.0
        %334 = vmatpush1.msra.mxu0 0.0
        %335 = vmatprep.subr.mxu0 0.0
        %336 = vmatpush1.msra.mxu0 0.0
        %337 = vmatprep.subr.mxu0 0.0
        %338 = vmatpush1.msra.mxu0 0.0
        %339 = vmatprep.subr.mxu0 0.0
        %340 = vmatpush1.msra.mxu0 0.0
        %341 = vmatprep.subr.mxu0 0.0
        %342 = vmatpush1.msra.mxu0 0.0
        %343 = vmatprep.subr.mxu0 0.0
        %344 = vmatpush1.msra.mxu0 0.0
        %345 = vmatprep.subr.mxu0 0.0
        %346 = vmatpush1.msra.mxu0 0.0
        %347 = vmatprep.subr.mxu0 0.0
        %348 = vmatpush1.msra.mxu0 0.0
        %349 = vmatprep.subr.mxu0 0.0
        %350 = vmatpush1.msra.mxu0 0.0
        %351 = vmatprep.subr.mxu0 0.0
        %352 = vmatpush1.msra.mxu0 0.0
        %353 = vmatprep.subr.mxu0 0.0
        %354 = vmatpush1.msra.mxu0 0.0
        %355 = vmatprep.mubr.f32.mxu0 0.0
        %356 = vmatmul.mubr.f32.gmra.mrb[0].mxu0 %v286
        %v357 = vpop.f32.mrb[0].mxu0
        %v358 = vadd.f32 0.0, %v357
        %v359 = vpop.f32.mrb[0].mxu0
        %360 = vmatprep.mubr.f32.mxu0 0.0
        %361 = vmatmul.mubr.f32.gmra.mrb[0].mxu0 %v289
        %v362 = vpop.f32.mrb[0].mxu0
        %v363 = vadd.f32 0.0, %v362
        %v364 = vpop.f32.mrb[0].mxu0
        %365 = vdwg.mxu0
        %v367 = vlaneseq
        %v368 = vshrl.u32 %v367, 7
        %v369 = vsub.s32 0, %v368
        %v370 = vrot.slane %v273, %v369
        %v372 = vadd.f32 %v370, %v358
        %v373 = vadd.f32 %v370, %v363
        %v374 = vld [vmem:[%s237 + $0x1] sm:$0xff]
        %v375 = vld [vmem:[%s237 + $0x9] sm:$0xff]
        %s376 = scalar_lea.vmem [#allocation6], 64
        %v377 = vld [vmem:[%s376] sm:$0xff]
        %v378 = vld [vmem:[%s376 + $0x8] sm:$0xff]
        %v379 = vld [vmem:[%s376 + $0x10] sm:$0xff]
        %v380 = vld [vmem:[%s376 + $0x18] sm:$0xff]
        %v381 = vld [vmem:[%s376 + $0x20] sm:$0xff]
        %v382 = vld [vmem:[%s376 + $0x28] sm:$0xff]
        %v383 = vld [vmem:[%s376 + $0x30] sm:$0xff]
        %v384 = vld [vmem:[%s376 + $0x38] sm:$0xff]
        %v386 = vsel %vm284, %v374, 0
        %v389 = vsel %vm284, %v375, 0
        %391 = vmatprep.subr.mxu0 0.0
        %392 = vmatpush1.msra.mxu0 %v377
        %393 = vmatprep.subr.mxu0 0.0
        %394 = vmatpush1.msra.mxu0 %v378
        %395 = vmatprep.subr.mxu0 0.0
        %396 = vmatpush1.msra.mxu0 %v379
        %397 = vmatprep.subr.mxu0 0.0
        %398 = vmatpush1.msra.mxu0 %v380
        %399 = vmatprep.subr.mxu0 0.0
        %400 = vmatpush1.msra.mxu0 %v381
        %401 = vmatprep.subr.mxu0 0.0
        %402 = vmatpush1.msra.mxu0 %v382
        %403 = vmatprep.subr.mxu0 0.0
        %404 = vmatpush1.msra.mxu0 %v383
        %405 = vmatprep.subr.mxu0 0.0
        %406 = vmatpush1.msra.mxu0 %v384
        %407 = vmatprep.subr.mxu0 0.0
        %408 = vmatpush1.msra.mxu0 0.0
        %409 = vmatprep.subr.mxu0 0.0
        %410 = vmatpush1.msra.mxu0 0.0
        %411 = vmatprep.subr.mxu0 0.0
        %412 = vmatpush1.msra.mxu0 0.0
        %413 = vmatprep.subr.mxu0 0.0
        %414 = vmatpush1.msra.mxu0 0.0
        %415 = vmatprep.subr.mxu0 0.0
        %416 = vmatpush1.msra.mxu0 0.0
        %417 = vmatprep.subr.mxu0 0.0
        %418 = vmatpush1.msra.mxu0 0.0
        %419 = vmatprep.subr.mxu0 0.0
        %420 = vmatpush1.msra.mxu0 0.0
        %421 = vmatprep.subr.mxu0 0.0
        %422 = vmatpush1.msra.mxu0 0.0
        %423 = vmatprep.subr.mxu0 0.0
        %424 = vmatpush1.msra.mxu0 0.0
        %425 = vmatprep.subr.mxu0 0.0
        %426 = vmatpush1.msra.mxu0 0.0
        %427 = vmatprep.subr.mxu0 0.0
        %428 = vmatpush1.msra.mxu0 0.0
        %429 = vmatprep.subr.mxu0 0.0
        %430 = vmatpush1.msra.mxu0 0.0
        %431 = vmatprep.subr.mxu0 0.0
        %432 = vmatpush1.msra.mxu0 0.0
        %433 = vmatprep.subr.mxu0 0.0
        %434 = vmatpush1.msra.mxu0 0.0
        %435 = vmatprep.subr.mxu0 0.0
        %436 = vmatpush1.msra.mxu0 0.0
        %437 = vmatprep.subr.mxu0 0.0
        %438 = vmatpush1.msra.mxu0 0.0
        %439 = vmatprep.subr.mxu0 0.0
        %440 = vmatpush1.msra.mxu0 0.0
        %441 = vmatprep.subr.mxu0 0.0
        %442 = vmatpush1.msra.mxu0 0.0
        %443 = vmatprep.subr.mxu0 0.0
        %444 = vmatpush1.msra.mxu0 0.0
        %445 = vmatprep.subr.mxu0 0.0
        %446 = vmatpush1.msra.mxu0 0.0
        %447 = vmatprep.subr.mxu0 0.0
        %448 = vmatpush1.msra.mxu0 0.0
        %449 = vmatprep.subr.mxu0 0.0
        %450 = vmatpush1.msra.mxu0 0.0
        %451 = vmatprep.subr.mxu0 0.0
        %452 = vmatpush1.msra.mxu0 0.0
        %453 = vmatprep.subr.mxu0 0.0
        %454 = vmatpush1.msra.mxu0 0.0
        %455 = vmatprep.mubr.f32.mxu0 0.0
        %456 = vmatmul.mubr.f32.gmra.mrb[0].mxu0 %v386
        %v457 = vpop.f32.mrb[0].mxu0
        %v458 = vadd.f32 0.0, %v457
        %v459 = vpop.f32.mrb[0].mxu0
        %460 = vmatprep.mubr.f32.mxu0 0.0
        %461 = vmatmul.mubr.f32.gmra.mrb[0].mxu0 %v389
        %v462 = vpop.f32.mrb[0].mxu0
        %v463 = vadd.f32 0.0, %v462
        %v464 = vpop.f32.mrb[0].mxu0
        %465 = vdwg.mxu0
        %v466 = vadd.f32 %v372, %v458
        %v467 = vadd.f32 %v373, %v463
        %v468 = vld [vmem:[%s237 + $0x2] sm:$0xff]
        %v469 = vld [vmem:[%s237 + $0xa] sm:$0xff]
        %s470 = scalar_lea.vmem [#allocation6], 128
        %v471 = vld [vmem:[%s470] sm:$0xff]
        %v472 = vld [vmem:[%s470 + $0x8] sm:$0xff]
        %v473 = vld [vmem:[%s470 + $0x10] sm:$0xff]
        %v474 = vld [vmem:[%s470 + $0x18] sm:$0xff]
        %v475 = vld [vmem:[%s470 + $0x20] sm:$0xff]
        %v476 = vld [vmem:[%s470 + $0x28] sm:$0xff]
        %v477 = vld [vmem:[%s470 + $0x30] sm:$0xff]
        %v478 = vld [vmem:[%s470 + $0x38] sm:$0xff]
        %v480 = vsel %vm284, %v468, 0
        %v483 = vsel %vm284, %v469, 0
        %485 = vmatprep.subr.mxu0 0.0
        %486 = vmatpush1.msra.mxu0 %v471
        %487 = vmatprep.subr.mxu0 0.0
        %488 = vmatpush1.msra.mxu0 %v472
        %489 = vmatprep.subr.mxu0 0.0
        %490 = vmatpush1.msra.mxu0 %v473
        %491 = vmatprep.subr.mxu0 0.0
        %492 = vmatpush1.msra.mxu0 %v474
        %493 = vmatprep.subr.mxu0 0.0
        %494 = vmatpush1.msra.mxu0 %v475
        %495 = vmatprep.subr.mxu0 0.0
        %496 = vmatpush1.msra.mxu0 %v476
        %497 = vmatprep.subr.mxu0 0.0
        %498 = vmatpush1.msra.mxu0 %v477
        %499 = vmatprep.subr.mxu0 0.0
        %500 = vmatpush1.msra.mxu0 %v478
        %501 = vmatprep.subr.mxu0 0.0
        %502 = vmatpush1.msra.mxu0 0.0
        %503 = vmatprep.subr.mxu0 0.0
        %504 = vmatpush1.msra.mxu0 0.0
        %505 = vmatprep.subr.mxu0 0.0
        %506 = vmatpush1.msra.mxu0 0.0
        %507 = vmatprep.subr.mxu0 0.0
        %508 = vmatpush1.msra.mxu0 0.0
        %509 = vmatprep.subr.mxu0 0.0
        %510 = vmatpush1.msra.mxu0 0.0
        %511 = vmatprep.subr.mxu0 0.0
        %512 = vmatpush1.msra.mxu0 0.0
        %513 = vmatprep.subr.mxu0 0.0
        %514 = vmatpush1.msra.mxu0 0.0
        %515 = vmatprep.subr.mxu0 0.0
        %516 = vmatpush1.msra.mxu0 0.0
        %517 = vmatprep.subr.mxu0 0.0
        %518 = vmatpush1.msra.mxu0 0.0
        %519 = vmatprep.subr.mxu0 0.0
        %520 = vmatpush1.msra.mxu0 0.0
        %521 = vmatprep.subr.mxu0 0.0
        %522 = vmatpush1.msra.mxu0 0.0
        %523 = vmatprep.subr.mxu0 0.0
        %524 = vmatpush1.msra.mxu0 0.0
        %525 = vmatprep.subr.mxu0 0.0
        %526 = vmatpush1.msra.mxu0 0.0
        %527 = vmatprep.subr.mxu0 0.0
        %528 = vmatpush1.msra.mxu0 0.0
        %529 = vmatprep.subr.mxu0 0.0
        %530 = vmatpush1.msra.mxu0 0.0
        %531 = vmatprep.subr.mxu0 0.0
        %532 = vmatpush1.msra.mxu0 0.0
        %533 = vmatprep.subr.mxu0 0.0
        %534 = vmatpush1.msra.mxu0 0.0
        %535 = vmatprep.subr.mxu0 0.0
        %536 = vmatpush1.msra.mxu0 0.0
        %537 = vmatprep.subr.mxu0 0.0
        %538 = vmatpush1.msra.mxu0 0.0
        %539 = vmatprep.subr.mxu0 0.0
        %540 = vmatpush1.msra.mxu0 0.0
        %541 = vmatprep.subr.mxu0 0.0
        %542 = vmatpush1.msra.mxu0 0.0
        %543 = vmatprep.subr.mxu0 0.0
        %544 = vmatpush1.msra.mxu0 0.0
        %545 = vmatprep.subr.mxu0 0.0
        %546 = vmatpush1.msra.mxu0 0.0
        %547 = vmatprep.subr.mxu0 0.0
        %548 = vmatpush1.msra.mxu0 0.0
        %549 = vmatprep.mubr.f32.mxu0 0.0
        %550 = vmatmul.mubr.f32.gmra.mrb[0].mxu0 %v480
        %v551 = vpop.f32.mrb[0].mxu0
        %v552 = vadd.f32 0.0, %v551
        %v553 = vpop.f32.mrb[0].mxu0
        %554 = vmatprep.mubr.f32.mxu0 0.0
        %555 = vmatmul.mubr.f32.gmra.mrb[0].mxu0 %v483
        %v556 = vpop.f32.mrb[0].mxu0
        %v557 = vadd.f32 0.0, %v556
        %v558 = vpop.f32.mrb[0].mxu0
        %559 = vdwg.mxu0
        %v560 = vadd.f32 %v466, %v552
        %v561 = vadd.f32 %v467, %v557
        %v562 = vmax.f32 %v560, 0.0
        %v563 = vmax.f32 %v561, 0.0
        %564 = vst [vmem:[#allocation2] sm:$0xff] %v562
        %565 = vst [vmem:[#allocation2 + $0x8] sm:$0xff] %v563
        %v566 = vld [vmem:[%s4] sm:$0x1]
        %v567 = vld [vmem:[#allocation2] sm:$0xff]
        %v568 = vld [vmem:[#allocation2 + $0x8] sm:$0xff]
        %v569 = vld [vmem:[#allocation8] sm:$0xff]
        %v570 = vld [vmem:[#allocation8 + $0x8] sm:$0xff]
        %v571 = vld [vmem:[#allocation8 + $0x10] sm:$0xff]
        %v572 = vld [vmem:[#allocation8 + $0x18] sm:$0xff]
        %v573 = vld [vmem:[#allocation8 + $0x20] sm:$0xff]
        %v574 = vld [vmem:[#allocation8 + $0x28] sm:$0xff]
        %v575 = vld [vmem:[#allocation8 + $0x30] sm:$0xff]
        %v576 = vld [vmem:[#allocation8 + $0x38] sm:$0xff]
        %v577 = vld [vmem:[#allocation8 + $0x40] sm:$0xff]
        %v578 = vld [vmem:[#allocation8 + $0x48] sm:$0xff]
        %v579 = vld [vmem:[#allocation8 + $0x50] sm:$0xff]
        %v580 = vld [vmem:[#allocation8 + $0x58] sm:$0xff]
        %v581 = vld [vmem:[#allocation8 + $0x60] sm:$0xff]
        %v582 = vld [vmem:[#allocation8 + $0x68] sm:$0xff]
        %v583 = vld [vmem:[#allocation8 + $0x70] sm:$0xff]
        %v584 = vld [vmem:[#allocation8 + $0x78] sm:$0xff]
        %585 = vmatprep.subr.mxu0 0.0
        %586 = vmatpush1.msra.mxu0 %v569
        %587 = vmatprep.subr.mxu0 0.0
        %588 = vmatpush1.msra.mxu0 %v570
        %589 = vmatprep.subr.mxu0 0.0
        %590 = vmatpush1.msra.mxu0 %v571
        %591 = vmatprep.subr.mxu0 0.0
        %592 = vmatpush1.msra.mxu0 %v572
        %593 = vmatprep.subr.mxu0 0.0
        %594 = vmatpush1.msra.mxu0 %v573
        %595 = vmatprep.subr.mxu0 0.0
        %596 = vmatpush1.msra.mxu0 %v574
        %597 = vmatprep.subr.mxu0 0.0
        %598 = vmatpush1.msra.mxu0 %v575
        %599 = vmatprep.subr.mxu0 0.0
        %600 = vmatpush1.msra.mxu0 %v576
        %601 = vmatprep.subr.mxu0 0.0
        %602 = vmatpush1.msra.mxu0 %v577
        %603 = vmatprep.subr.mxu0 0.0
        %604 = vmatpush1.msra.mxu0 %v578
        %605 = vmatprep.subr.mxu0 0.0
        %606 = vmatpush1.msra.mxu0 %v579
        %607 = vmatprep.subr.mxu0 0.0
        %608 = vmatpush1.msra.mxu0 %v580
        %609 = vmatprep.subr.mxu0 0.0
        %610 = vmatpush1.msra.mxu0 %v581
        %611 = vmatprep.subr.mxu0 0.0
        %612 = vmatpush1.msra.mxu0 %v582
        %613 = vmatprep.subr.mxu0 0.0
        %614 = vmatpush1.msra.mxu0 %v583
        %615 = vmatprep.subr.mxu0 0.0
        %616 = vmatpush1.msra.mxu0 %v584
        %617 = vmatprep.subr.mxu0 0.0
        %618 = vmatpush1.msra.mxu0 0.0
        %619 = vmatprep.subr.mxu0 0.0
        %620 = vmatpush1.msra.mxu0 0.0
        %621 = vmatprep.subr.mxu0 0.0
        %622 = vmatpush1.msra.mxu0 0.0
        %623 = vmatprep.subr.mxu0 0.0
        %624 = vmatpush1.msra.mxu0 0.0
        %625 = vmatprep.subr.mxu0 0.0
        %626 = vmatpush1.msra.mxu0 0.0
        %627 = vmatprep.subr.mxu0 0.0
        %628 = vmatpush1.msra.mxu0 0.0
        %629 = vmatprep.subr.mxu0 0.0
        %630 = vmatpush1.msra.mxu0 0.0
        %631 = vmatprep.subr.mxu0 0.0
        %632 = vmatpush1.msra.mxu0 0.0
        %633 = vmatprep.subr.mxu0 0.0
        %634 = vmatpush1.msra.mxu0 0.0
        %635 = vmatprep.subr.mxu0 0.0
        %636 = vmatpush1.msra.mxu0 0.0
        %637 = vmatprep.subr.mxu0 0.0
        %638 = vmatpush1.msra.mxu0 0.0
        %639 = vmatprep.subr.mxu0 0.0
        %640 = vmatpush1.msra.mxu0 0.0
        %641 = vmatprep.subr.mxu0 0.0
        %642 = vmatpush1.msra.mxu0 0.0
        %643 = vmatprep.subr.mxu0 0.0
        %644 = vmatpush1.msra.mxu0 0.0
        %645 = vmatprep.subr.mxu0 0.0
        %646 = vmatpush1.msra.mxu0 0.0
        %647 = vmatprep.subr.mxu0 0.0
        %648 = vmatpush1.msra.mxu0 0.0
        %649 = vmatprep.mubr.f32.mxu0 0.0
        %650 = vmatmul.mubr.f32.gmra.mrb[0].mxu0 %v567
        %v651 = vpop.f32.mrb[0].mxu0
        %v652 = vadd.f32 0.0, %v651
        %v653 = vpop.f32.mrb[0].mxu0
        %654 = vmatprep.mubr.f32.mxu0 0.0
        %655 = vmatmul.mubr.f32.gmra.mrb[0].mxu0 %v568
        %v656 = vpop.f32.mrb[0].mxu0
        %v657 = vadd.f32 0.0, %v656
        %v658 = vpop.f32.mrb[0].mxu0
        %659 = vdwg.mxu0
        %v661 = vlaneseq
        %v662 = vshrl.u32 %v661, 7
        %v663 = vsub.s32 0, %v662
        %v664 = vrot.slane %v566, %v663
        %v666 = vadd.f32 %v664, %v652
        %v667 = vadd.f32 %v664, %v657
        %v668 = vld [vmem:[#allocation2 + $0x1] sm:$0xff]
        %v669 = vld [vmem:[#allocation2 + $0x9] sm:$0xff]
        %s670 = scalar_lea.vmem [#allocation8], 128
        %v671 = vld [vmem:[%s670] sm:$0xff]
        %v672 = vld [vmem:[%s670 + $0x8] sm:$0xff]
        %v673 = vld [vmem:[%s670 + $0x10] sm:$0xff]
        %v674 = vld [vmem:[%s670 + $0x18] sm:$0xff]
        %v675 = vld [vmem:[%s670 + $0x20] sm:$0xff]
        %v676 = vld [vmem:[%s670 + $0x28] sm:$0xff]
        %v677 = vld [vmem:[%s670 + $0x30] sm:$0xff]
        %v678 = vld [vmem:[%s670 + $0x38] sm:$0xff]
        %v679 = vld [vmem:[%s670 + $0x40] sm:$0xff]
        %v680 = vld [vmem:[%s670 + $0x48] sm:$0xff]
        %v681 = vld [vmem:[%s670 + $0x50] sm:$0xff]
        %v682 = vld [vmem:[%s670 + $0x58] sm:$0xff]
        %v683 = vld [vmem:[%s670 + $0x60] sm:$0xff]
        %v684 = vld [vmem:[%s670 + $0x68] sm:$0xff]
        %v685 = vld [vmem:[%s670 + $0x70] sm:$0xff]
        %v686 = vld [vmem:[%s670 + $0x78] sm:$0xff]
        %687 = vmatprep.subr.mxu0 0.0
        %688 = vmatpush1.msra.mxu0 %v671
        %689 = vmatprep.subr.mxu0 0.0
        %690 = vmatpush1.msra.mxu0 %v672
        %691 = vmatprep.subr.mxu0 0.0
        %692 = vmatpush1.msra.mxu0 %v673
        %693 = vmatprep.subr.mxu0 0.0
        %694 = vmatpush1.msra.mxu0 %v674
        %695 = vmatprep.subr.mxu0 0.0
        %696 = vmatpush1.msra.mxu0 %v675
        %697 = vmatprep.subr.mxu0 0.0
        %698 = vmatpush1.msra.mxu0 %v676
        %699 = vmatprep.subr.mxu0 0.0
        %700 = vmatpush1.msra.mxu0 %v677
        %701 = vmatprep.subr.mxu0 0.0
        %702 = vmatpush1.msra.mxu0 %v678
        %703 = vmatprep.subr.mxu0 0.0
        %704 = vmatpush1.msra.mxu0 %v679
        %705 = vmatprep.subr.mxu0 0.0
        %706 = vmatpush1.msra.mxu0 %v680
        %707 = vmatprep.subr.mxu0 0.0
        %708 = vmatpush1.msra.mxu0 %v681
        %709 = vmatprep.subr.mxu0 0.0
        %710 = vmatpush1.msra.mxu0 %v682
        %711 = vmatprep.subr.mxu0 0.0
        %712 = vmatpush1.msra.mxu0 %v683
        %713 = vmatprep.subr.mxu0 0.0
        %714 = vmatpush1.msra.mxu0 %v684
        %715 = vmatprep.subr.mxu0 0.0
        %716 = vmatpush1.msra.mxu0 %v685
        %717 = vmatprep.subr.mxu0 0.0
        %718 = vmatpush1.msra.mxu0 %v686
        %719 = vmatprep.subr.mxu0 0.0
        %720 = vmatpush1.msra.mxu0 0.0
        %721 = vmatprep.subr.mxu0 0.0
        %722 = vmatpush1.msra.mxu0 0.0
        %723 = vmatprep.subr.mxu0 0.0
        %724 = vmatpush1.msra.mxu0 0.0
        %725 = vmatprep.subr.mxu0 0.0
        %726 = vmatpush1.msra.mxu0 0.0
        %727 = vmatprep.subr.mxu0 0.0
        %728 = vmatpush1.msra.mxu0 0.0
        %729 = vmatprep.subr.mxu0 0.0
        %730 = vmatpush1.msra.mxu0 0.0
        %731 = vmatprep.subr.mxu0 0.0
        %732 = vmatpush1.msra.mxu0 0.0
        %733 = vmatprep.subr.mxu0 0.0
        %734 = vmatpush1.msra.mxu0 0.0
        %735 = vmatprep.subr.mxu0 0.0
        %736 = vmatpush1.msra.mxu0 0.0
        %737 = vmatprep.subr.mxu0 0.0
        %738 = vmatpush1.msra.mxu0 0.0
        %739 = vmatprep.subr.mxu0 0.0
        %740 = vmatpush1.msra.mxu0 0.0
        %741 = vmatprep.subr.mxu0 0.0
        %742 = vmatpush1.msra.mxu0 0.0
        %743 = vmatprep.subr.mxu0 0.0
        %744 = vmatpush1.msra.mxu0 0.0
        %745 = vmatprep.subr.mxu0 0.0
        %746 = vmatpush1.msra.mxu0 0.0
        %747 = vmatprep.subr.mxu0 0.0
        %748 = vmatpush1.msra.mxu0 0.0
        %749 = vmatprep.subr.mxu0 0.0
        %750 = vmatpush1.msra.mxu0 0.0
        %751 = vmatprep.mubr.f32.mxu0 0.0
        %752 = vmatmul.mubr.f32.gmra.mrb[0].mxu0 %v668
        %v753 = vpop.f32.mrb[0].mxu0
        %v754 = vadd.f32 0.0, %v753
        %v755 = vpop.f32.mrb[0].mxu0
        %756 = vmatprep.mubr.f32.mxu0 0.0
        %757 = vmatmul.mubr.f32.gmra.mrb[0].mxu0 %v669
        %v758 = vpop.f32.mrb[0].mxu0
        %v759 = vadd.f32 0.0, %v758
        %v760 = vpop.f32.mrb[0].mxu0
        %761 = vdwg.mxu0
        %v762 = vadd.f32 %v666, %v754
        %v763 = vadd.f32 %v667, %v759
        %v764 = vld [vmem:[#allocation2 + $0x2] sm:$0xff]
        %v765 = vld [vmem:[#allocation2 + $0xa] sm:$0xff]
        %s766 = scalar_lea.vmem [#allocation8], 256
        %v767 = vld [vmem:[%s766] sm:$0xff]
        %v768 = vld [vmem:[%s766 + $0x8] sm:$0xff]
        %v769 = vld [vmem:[%s766 + $0x10] sm:$0xff]
        %v770 = vld [vmem:[%s766 + $0x18] sm:$0xff]
        %v771 = vld [vmem:[%s766 + $0x20] sm:$0xff]
        %v772 = vld [vmem:[%s766 + $0x28] sm:$0xff]
        %v773 = vld [vmem:[%s766 + $0x30] sm:$0xff]
        %v774 = vld [vmem:[%s766 + $0x38] sm:$0xff]
        %v775 = vld [vmem:[%s766 + $0x40] sm:$0xff]
        %v776 = vld [vmem:[%s766 + $0x48] sm:$0xff]
        %v777 = vld [vmem:[%s766 + $0x50] sm:$0xff]
        %v778 = vld [vmem:[%s766 + $0x58] sm:$0xff]
        %v779 = vld [vmem:[%s766 + $0x60] sm:$0xff]
        %v780 = vld [vmem:[%s766 + $0x68] sm:$0xff]
        %v781 = vld [vmem:[%s766 + $0x70] sm:$0xff]
        %v782 = vld [vmem:[%s766 + $0x78] sm:$0xff]
        %783 = vmatprep.subr.mxu0 0.0
        %784 = vmatpush1.msra.mxu0 %v767
        %785 = vmatprep.subr.mxu0 0.0
        %786 = vmatpush1.msra.mxu0 %v768
        %787 = vmatprep.subr.mxu0 0.0
        %788 = vmatpush1.msra.mxu0 %v769
        %789 = vmatprep.subr.mxu0 0.0
        %790 = vmatpush1.msra.mxu0 %v770
        %791 = vmatprep.subr.mxu0 0.0
        %792 = vmatpush1.msra.mxu0 %v771
        %793 = vmatprep.subr.mxu0 0.0
        %794 = vmatpush1.msra.mxu0 %v772
        %795 = vmatprep.subr.mxu0 0.0
        %796 = vmatpush1.msra.mxu0 %v773
        %797 = vmatprep.subr.mxu0 0.0
        %798 = vmatpush1.msra.mxu0 %v774
        %799 = vmatprep.subr.mxu0 0.0
        %800 = vmatpush1.msra.mxu0 %v775
        %801 = vmatprep.subr.mxu0 0.0
        %802 = vmatpush1.msra.mxu0 %v776
        %803 = vmatprep.subr.mxu0 0.0
        %804 = vmatpush1.msra.mxu0 %v777
        %805 = vmatprep.subr.mxu0 0.0
        %806 = vmatpush1.msra.mxu0 %v778
        %807 = vmatprep.subr.mxu0 0.0
        %808 = vmatpush1.msra.mxu0 %v779
        %809 = vmatprep.subr.mxu0 0.0
        %810 = vmatpush1.msra.mxu0 %v780
        %811 = vmatprep.subr.mxu0 0.0
        %812 = vmatpush1.msra.mxu0 %v781
        %813 = vmatprep.subr.mxu0 0.0
        %814 = vmatpush1.msra.mxu0 %v782
        %815 = vmatprep.subr.mxu0 0.0
        %816 = vmatpush1.msra.mxu0 0.0
        %817 = vmatprep.subr.mxu0 0.0
        %818 = vmatpush1.msra.mxu0 0.0
        %819 = vmatprep.subr.mxu0 0.0
        %820 = vmatpush1.msra.mxu0 0.0
        %821 = vmatprep.subr.mxu0 0.0
        %822 = vmatpush1.msra.mxu0 0.0
        %823 = vmatprep.subr.mxu0 0.0
        %824 = vmatpush1.msra.mxu0 0.0
        %825 = vmatprep.subr.mxu0 0.0
        %826 = vmatpush1.msra.mxu0 0.0
        %827 = vmatprep.subr.mxu0 0.0
        %828 = vmatpush1.msra.mxu0 0.0
        %829 = vmatprep.subr.mxu0 0.0
        %830 = vmatpush1.msra.mxu0 0.0
        %831 = vmatprep.subr.mxu0 0.0
        %832 = vmatpush1.msra.mxu0 0.0
        %833 = vmatprep.subr.mxu0 0.0
        %834 = vmatpush1.msra.mxu0 0.0
        %835 = vmatprep.subr.mxu0 0.0
        %836 = vmatpush1.msra.mxu0 0.0
        %837 = vmatprep.subr.mxu0 0.0
        %838 = vmatpush1.msra.mxu0 0.0
        %839 = vmatprep.subr.mxu0 0.0
        %840 = vmatpush1.msra.mxu0 0.0
        %841 = vmatprep.subr.mxu0 0.0
        %842 = vmatpush1.msra.mxu0 0.0
        %843 = vmatprep.subr.mxu0 0.0
        %844 = vmatpush1.msra.mxu0 0.0
        %845 = vmatprep.subr.mxu0 0.0
        %846 = vmatpush1.msra.mxu0 0.0
        %847 = vmatprep.mubr.f32.mxu0 0.0
        %848 = vmatmul.mubr.f32.gmra.mrb[0].mxu0 %v764
        %v849 = vpop.f32.mrb[0].mxu0
        %v850 = vadd.f32 0.0, %v849
        %v851 = vpop.f32.mrb[0].mxu0
        %852 = vmatprep.mubr.f32.mxu0 0.0
        %853 = vmatmul.mubr.f32.gmra.mrb[0].mxu0 %v765
        %v854 = vpop.f32.mrb[0].mxu0
        %v855 = vadd.f32 0.0, %v854
        %v856 = vpop.f32.mrb[0].mxu0
        %857 = vdwg.mxu0
        %v858 = vadd.f32 %v762, %v850
        %v859 = vadd.f32 %v763, %v855
        %860 = vst [vmem:[%s271] sm:$0xff] %v858
        %861 = vst [vmem:[%s271 + $0x8] sm:$0xff] %v859
        %s862 = sand.u32 %s141, 1
        %s863 = scalar_lea.sflag [#allocation5], %s862
        %s864 = sand.u32 %s141, 1
        %s865 = smul.addr %s864, 16
        %s866 = scalar_lea.vmem [#allocation9], %s865
        // Predicated region
        $region53: #{tpu_custom_call.1} parent=39 // pred_check
          %p867 = pneg %p151
        $region54: #{tpu_custom_call.1} parent=39 // pred_check_branch
          %869 = sbr.rel (%p867) target = $region56
        $region55: #{tpu_custom_call.1} parent=39 // pred_region
          %s871 = ssub.s32 256, 256
          %872 = vsyncadd %s863, %s871
          %s873 = smul.addr %s23, 2
          %s874 = smul.addr %s873, 128
          %s875 = scalar_lea.hbm %s5, %s874
          %s876 = sshll.u32 %s866, 4
          %s877 = int_to_ptr.vmem [resolvable:$true] %s876
          %882 = dma.vmem_to_hbm [thread:$0]  %s877, 256, %s875, %s863, 128, 128, 8
        $region56: #{tpu_custom_call.1} parent=39 // pred_fallthru
          _
      $region40: #{tpu_custom_call.1} parent=5 // pred_fallthru
        _
      %p883 = scmp.le.s32.totalorder 2, %s18
      // Predicated region
      $region57: #{tpu_custom_call.1} parent=5 // pred_check
        %p884 = pneg %p883
      $region58: #{tpu_custom_call.1} parent=5 // pred_check_branch
        %886 = sbr.rel (%p884) target = $region60
      $region59: #{tpu_custom_call.1} parent=5 // pred_region
        %s887 = ssub.s32 %s18, 2
        // Predicated region
        $region61: #{tpu_custom_call.1} parent=59 // pred_check
          %p888 = pneg %p157
        $region62: #{tpu_custom_call.1} parent=59 // pred_check_branch
          %890 = sbr.rel (%p888) target = $region64
        $region63: #{tpu_custom_call.1} parent=59 // pred_region
          %s891 = sand.u32 %s142, 1
          %s892 = scalar_lea.sflag [#allocation5], %s891
          %s893 = sand.u32 %s142, 1
          %s894 = smul.addr %s893, 16
          %s895 = scalar_lea.vmem [#allocation9], %s894
          %896 = dma.done %s892, 256
        $region64: #{tpu_custom_call.1} parent=59 // pred_fallthru
          _
      $region60: #{tpu_custom_call.1} parent=5 // pred_fallthru
        _
    $region6: #{tpu_custom_call.1} parent=1 // loop_footer
      %s22 = sadd.s32 1, %s18
    $region7: #{tpu_custom_call.1} parent=1 // loop_footer_branch
      %17 = sbr.rel target = $region3
    $region8: #{tpu_custom_call.1} parent=1 // loop_exit
      _
    %897 = vsyncpa [#allocation4], 1
    %s898 = scalar_lea.sflag [#allocation4], 1
    %899 = vsyncpa %s898, 1
    %900 = vsyncpa [#allocation7], 1
    %901 = vsyncpa [#allocation5], 1
    %s902 = scalar_lea.sflag [#allocation5], 1
    %903 = vsyncpa %s902, 1

</llo_original>
